<compile_context>
chip_gen: v7x
topology: tpu7x:2x2x1
jax: 0.10.0
libtpu: 0.0.40
codegen_flags: <defaults>
</compile_context>

<pallas_src>
import jax
import jax.numpy as jnp
import numpy as np
from jax.experimental import pallas as pl
from jax.experimental.pallas import tpu as pltpu


_PIX_TILE_MAX = 2048   # image-head pixels per grid step (lane dim)
_ROI_TILE = 256        # instance-head ROIs per grid step (lane dim)


def _round_up(v, m):
    return (v + m - 1) // m * m


def _cdiv(a, b):
    return -(-a // b)


# ----------------------------------------------------------------------------
# Kernels
# ----------------------------------------------------------------------------

def _img_head_kernel(x_ref, w1_ref, w2_ref, b2_ref, out_ref):
    """Per-pixel 1x1-conv head, channel-major (pixels on lanes).

    x_ref : (1, C_pad, T) bf16  rows [C:] are constant 1 (bias rows)
    w1_ref: (512, C_pad)  bf16  column C holds conv1 bias, columns C+1.. are 0
    w2_ref: (8, 512)      bf16  row 0 = conv2 weight, rows 1..7 zero
    b2_ref: (1, 1)        f32
    out   : (1, 1, T)     f32
    """
    # conv1 + bias on the MXU (bias folded via the ones rows); only ReLU on VPU.
    h = jnp.dot(w1_ref[...], x_ref[0], preferred_element_type=jnp.float32)   # (512, T)
    h = jnp.maximum(h, 0.0)
    # conv2 (1-wide) also on the MXU via the 8-row padded weight.
    y8 = jnp.dot(w2_ref[...], h.astype(jnp.bfloat16),
                 preferred_element_type=jnp.float32)                          # (8, T)
    out_ref[...] = (y8[0:1, :] + b2_ref[...])[None]


def _ins_head_kernel(x_ref, w1_ref, b1_ref, w2_ref, b2_ref, w3_ref, b3_ref,
                     out_ref):
    """3-layer MLP instance head on pre-pooled features (ROIs on lanes).

    x_ref : (F, T)      bf16   pooled features
    w1_ref: (1024, F)   bf16   b1_ref: (1024, 1) f32
    w2_ref: (1024, 1024) bf16  b2_ref: (1024, 1) f32
    w3_ref: (8, 1024)   bf16   row 0 = fc3 weight      b3_ref: (1, 1) f32
    out   : (1, T)      f32
    """
    h = jnp.dot(w1_ref[...], x_ref[...], preferred_element_type=jnp.float32)  # (1024, T)
    h = jnp.maximum(h + b1_ref[...], 0.0)
    # TODO(synk): F.dropout(p=0.5) is identity in eval; training-mode dropout not implemented.
    h = jnp.dot(w2_ref[...], h.astype(jnp.bfloat16),
                preferred_element_type=jnp.float32)                           # (1024, T)
    h = jnp.maximum(h + b2_ref[...], 0.0)
    y8 = jnp.dot(w3_ref[...], h.astype(jnp.bfloat16),
                 preferred_element_type=jnp.float32)                          # (8, T)
    out_ref[...] = y8[0:1, :] + b3_ref[...]


# ----------------------------------------------------------------------------
# Wrappers (layout plumbing + pallas_call setup)
# ----------------------------------------------------------------------------

def da_img_head_level(f, w1p, w2p, b2):
    """DAImgHead logits for one pyramid level. f: (N, C, H, W) -> (N, 1, H, W)."""
    n, c, hh, ww = f.shape
    hidden, c_pad = w1p.shape
    hw = hh * ww

    # Lane tile: large enough to amortize per-step overhead, but keep >= ~8 total
    # grid steps so both v7x TensorCores are used on small pyramid levels.
    want_inner = max(1, _cdiv(8, n))
    tile = _round_up(max(128, _cdiv(hw, want_inner)), 128)
    tile = min(tile, _PIX_TILE_MAX)
    hw_pad = _round_up(hw, tile)
    n_tiles = hw_pad // tile

    # Single XLA pass: view as (N, C, H*W), append constant-1 bias rows along C,
    # zero-pad pixels, cast to bf16.  No NCHW->CNHW transpose copy.
    x = f.reshape(n, c, hw)
    x = jnp.concatenate([x, jnp.ones((n, c_pad - c, hw), f.dtype)], axis=1)
    x = jnp.pad(x, ((0, 0), (0, 0), (0, hw_pad - hw))).astype(jnp.bfloat16)

    out = pl.pallas_call(
        _img_head_kernel,
        out_shape=jax.ShapeDtypeStruct((n, 1, hw_pad), jnp.float32),
        grid=(n, n_tiles),
        in_specs=[
            pl.BlockSpec((1, c_pad, tile), lambda b, i: (b, 0, i)),
            pl.BlockSpec((hidden, c_pad), lambda b, i: (0, 0)),
            pl.BlockSpec((8, hidden), lambda b, i: (0, 0)),
            pl.BlockSpec((1, 1), lambda b, i: (0, 0)),
        ],
        out_specs=pl.BlockSpec((1, 1, tile), lambda b, i: (b, 0, i)),
        compiler_params=pltpu.CompilerParams(
            dimension_semantics=("parallel", "parallel")),
    )(x, w1p, w2p, b2)

    return out[:, :, :hw].reshape(n, 1, hh, ww)


def da_ins_head(da_ins_feature, w1, b1, w2, b2, w3p, b3, resnet_backbone):
    """AvgPool (XLA) + DAInsHead MLP (Pallas). Returns (R, 1) logits."""
    if resnet_backbone:
        r, f, hh, ww = da_ins_feature.shape
        # AvgPool2d(7,7) + flatten done in plain XLA: the head is memory-bound,
        # so the kernel should not re-read the 49x larger tensor.
        pooled = jnp.mean(da_ins_feature.reshape(r, f, hh * ww), axis=-1)     # (R, F)
    else:
        pooled = da_ins_feature                                               # (R, F)
        r, f = pooled.shape

    # Tiny (R,F)->(F,R) transpose + bf16 cast in XLA; ROIs land on lanes.
    x = pooled.T.astype(jnp.bfloat16)                                         # (F, R)
    r_tile = min(_ROI_TILE, _round_up(max(r, 1), 128))
    r_pad = _round_up(r, r_tile)
    x = jnp.pad(x, ((0, 0), (0, r_pad - r)))
    n_tiles = r_pad // r_tile
    h1 = w1.shape[0]
    h2 = w2.shape[0]

    out = pl.pallas_call(
        _ins_head_kernel,
        out_shape=jax.ShapeDtypeStruct((1, r_pad), jnp.float32),
        grid=(n_tiles,),
        in_specs=[
            pl.BlockSpec((f, r_tile), lambda i: (0, i)),
            pl.BlockSpec((h1, f), lambda i: (0, 0)),
            pl.BlockSpec((h1, 1), lambda i: (0, 0)),
            pl.BlockSpec((h2, h1), lambda i: (0, 0)),
            pl.BlockSpec((h2, 1), lambda i: (0, 0)),
            pl.BlockSpec((8, h2), lambda i: (0, 0)),
            pl.BlockSpec((1, 1), lambda i: (0, 0)),
        ],
        out_specs=pl.BlockSpec((1, r_tile), lambda i: (0, i)),
        compiler_params=pltpu.CompilerParams(
            dimension_semantics=("parallel",)),
    )(x, w1, b1, w2, b2, w3p, b3)

    return out.reshape(-1)[:r].reshape(r, 1)


# ----------------------------------------------------------------------------
# Module
# ----------------------------------------------------------------------------

class DomainAdaptationModulePallas:
    """JAX/Pallas port of DomainAdaptationModule forward (eval path)."""

    def __init__(self, key, in_channels, num_ins_inputs, resnet_backbone=True,
                 img_weight=1.0, ins_weight=1.0, cst_weight=0.1):
        self.resnet_backbone = resnet_backbone
        self.img_weight = img_weight
        self.ins_weight = ins_weight
        self.cst_weight = cst_weight
        self.in_channels = in_channels

        ks = jax.random.split(key, 5)
        # DAImgHead: conv1_da (512, C, 1, 1) std=0.001, conv2_da (1, 512, 1, 1) std=0.001,
        # zero biases.  Stored channel-major with conv1 bias folded as an extra column
        # (matching the constant-1 rows appended to x) and conv2 padded to 8 rows.
        c_pad = _round_up(in_channels + 1, 8)
        w1 = 0.001 * jax.random.normal(ks[0], (512, in_channels), jnp.float32)
        b1 = jnp.zeros((512,), jnp.float32)
        w1p = jnp.zeros((512, c_pad), jnp.float32)
        w1p = w1p.at[:, :in_channels].set(w1).at[:, in_channels].set(b1)
        self.img_w1p = w1p.astype(jnp.bfloat16)
        w2 = 0.001 * jax.random.normal(ks[1], (512,), jnp.float32)
        self.img_w2p = jnp.zeros((8, 512), jnp.float32).at[0].set(w2).astype(jnp.bfloat16)
        self.img_b2 = jnp.zeros((1, 1), jnp.float32)

        # DAInsHead: fc1 (1024, F) std=0.01, fc2 (1024, 1024) std=0.01, fc3 (1, 1024) std=0.05,
        # zero biases.  fc3 weight padded to 8 rows for the MXU projection.
        self.ins_w1 = (0.01 * jax.random.normal(ks[2], (1024, num_ins_inputs),
                                                jnp.float32)).astype(jnp.bfloat16)
        self.ins_b1 = jnp.zeros((1024, 1), jnp.float32)
        self.ins_w2 = (0.01 * jax.random.normal(ks[3], (1024, 1024),
                                                jnp.float32)).astype(jnp.bfloat16)
        self.ins_b2 = jnp.zeros((1024, 1), jnp.float32)
        w3 = 0.05 * jax.random.normal(ks[4], (1024,), jnp.float32)
        self.ins_w3p = jnp.zeros((8, 1024), jnp.float32).at[0].set(w3).astype(jnp.bfloat16)
        self.ins_b3 = jnp.zeros((1, 1), jnp.float32)

    def __call__(self, img_features, da_ins_feature, da_ins_labels, targets=None):
        # GradientScalarLayer (grl_img / grl_ins / *_consist) is identity in forward,
        # so the "consist" branches share the same logits; only the sigmoid differs.
        da_img_features = [
            da_img_head_level(f, self.img_w1p, self.img_w2p, self.img_b2)
            for f in img_features
        ]
        da_ins_features = da_ins_head(
            da_ins_feature, self.ins_w1, self.ins_b1, self.ins_w2, self.ins_b2,
            self.ins_w3p, self.ins_b3, self.resnet_backbone)

        da_img_consist_features = [jax.nn.sigmoid(l) for l in da_img_features]
        da_ins_consist_features = jax.nn.sigmoid(da_ins_features)

        # TODO(synk): make_da_heads_loss_evaluator (training losses) is not part of the
        # provided module code; eval-mode forward returns an empty loss dict.
        losses = {}
        intermediates = {
            "da_img_features": da_img_features,
            "da_ins_features": da_ins_features,
            "da_img_consist_features": da_img_consist_features,
            "da_ins_consist_features": da_ins_consist_features,
        }
        return losses, intermediates


# ----------------------------------------------------------------------------
# Pure-JAX references (mirror the kernel's bf16 casts; HIGHEST precision matmuls)
# ----------------------------------------------------------------------------

_HI = jax.lax.Precision.HIGHEST


def _ref_img_head(f, w1p, w2p, b2, in_channels):
    w1 = w1p[:, :in_channels].astype(jnp.float32)
    b1 = w1p[:, in_channels].astype(jnp.float32)
    w2 = w2p[0].astype(jnp.float32)
    xb = f.astype(jnp.bfloat16).astype(jnp.float32)
    h = jnp.einsum('nchw,oc->nohw', xb, w1, precision=_HI) + b1.reshape(1, -1, 1, 1)
    h = jnp.maximum(h, 0.0)
    hb = h.astype(jnp.bfloat16).astype(jnp.float32)
    y = jnp.einsum('nohw,o->nhw', hb, w2, precision=_HI)[:, None] + b2.reshape(())
    return y


def _ref_ins_head(x_nchw, w1, b1, w2, b2, w3p, b3):
    r, c = x_nchw.shape[0], x_nchw.shape[1]
    pooled = jnp.mean(x_nchw.reshape(r, c, -1), axis=-1)
    pb = pooled.astype(jnp.bfloat16).astype(jnp.float32)
    h = jnp.maximum(jnp.einsum('rc,oc->ro', pb, w1.astype(jnp.float32), precision=_HI)
                    + b1.reshape(1, -1), 0.0)
    hb = h.astype(jnp.bfloat16).astype(jnp.float32)
    h2 = jnp.maximum(jnp.einsum('rc,oc->ro', hb, w2.astype(jnp.float32), precision=_HI)
                     + b2.reshape(1, -1), 0.0)
    h2b = h2.astype(jnp.bfloat16).astype(jnp.float32)
    y = jnp.einsum('rc,c->r', h2b, w3p[0].astype(jnp.float32), precision=_HI)[:, None] \
        + b3.reshape(())
    return y


# ----------------------------------------------------------------------------
# Main
# ----------------------------------------------------------------------------

if __name__ == "__main__":
    key = jax.random.PRNGKey(0)
    k_in, k_p1, k_p2, k_ins, k_lab = jax.random.split(key, 5)

    # Small synthetic config:
    #   BACKBONE.OUT_CHANNELS = 64 (image-head input channels)
    #   RES2_OUT_CHANNELS = 32 -> num_ins_inputs = 32 * 8 = 256 (ResNet backbone)
    in_channels = 64
    num_ins_inputs = 256
    num_rois = 8

    # Two pyramid levels of image features, NCHW.
    img_features = [
        jax.random.normal(k_p1, (2, in_channels, 16, 16), jnp.float32),
        jax.random.normal(k_p2, (2, in_channels, 8, 8), jnp.float32),
    ]
    # Instance-level ROI features (ResNet backbone path): (R, C, 7, 7).
    da_ins_feature = jax.random.normal(k_ins, (num_rois, num_ins_inputs, 7, 7),
                                       jnp.float32)
    da_ins_labels = (jax.random.uniform(k_lab, (num_rois,)) > 0.5).astype(jnp.float32)

    module = DomainAdaptationModulePallas(k_in, in_channels, num_ins_inputs,
                                          resnet_backbone=True)

    losses, feats = module(img_features, da_ins_feature, da_ins_labels)
    jax.block_until_ready(feats["da_ins_features"])
    jax.block_until_ready(feats["da_ins_consist_features"])
    for a, b in zip(feats["da_img_features"], feats["da_img_consist_features"]):
        jax.block_until_ready(a)
        jax.block_until_ready(b)

    # Shape sanity checks.
    assert feats["da_img_features"][0].shape == (2, 1, 16, 16)
    assert feats["da_img_features"][1].shape == (2, 1, 8, 8)
    assert feats["da_ins_features"].shape == (num_rois, 1)
    assert feats["da_ins_consist_features"].shape == (num_rois, 1)
    assert losses == {}

    # Numerical checks against pure-JAX references (tolerances cover bf16 rounding /
    # accumulation-order differences only; the refs replicate the kernel's bf16 casts).
    for fmap, got_l, got_s in zip(img_features,
                                  feats["da_img_features"],
                                  feats["da_img_consist_features"]):
        ref = _ref_img_head(fmap, module.img_w1p, module.img_w2p, module.img_b2,
                            in_channels)
        np.testing.assert_allclose(np.asarray(got_l), np.asarray(ref),
                                   rtol=0.1, atol=3e-5)
        np.testing.assert_allclose(np.asarray(got_s), np.asarray(jax.nn.sigmoid(ref)),
                                   rtol=0.05, atol=1e-4)
    ref_ins = _ref_ins_head(da_ins_feature, module.ins_w1, module.ins_b1,
                            module.ins_w2, module.ins_b2,
                            module.ins_w3p, module.ins_b3)
    np.testing.assert_allclose(np.asarray(feats["da_ins_features"]),
                               np.asarray(ref_ins), rtol=0.1, atol=5e-3)
    np.testing.assert_allclose(np.asarray(feats["da_ins_consist_features"]),
                               np.asarray(jax.nn.sigmoid(ref_ins)), rtol=0.05, atol=1e-3)

    print("KERNEL_OK")
</pallas_src>

<mosaic_0001>
module attributes {stable_mosaic.version = 11 : i64} {
  func.func @_img_head_kernel(%arg0: i32, %arg1: i32, %arg2: memref<1x72x128xbf16, #tpu.memory_space<vmem>>, %arg3: memref<512x72xbf16, #tpu.memory_space<vmem>>, %arg4: memref<8x512xbf16, #tpu.memory_space<vmem>>, %arg5: memref<1x1xf32, #tpu.memory_space<vmem>>, %arg6: memref<1x1x128xf32, #tpu.memory_space<vmem>>) attributes {dimension_semantics = [#tpu.dimension_semantics<parallel>, #tpu.dimension_semantics<parallel>], iteration_bounds = array<i64: 2, 2>, scalar_prefetch = 0 : i64, scratch_operands = 0 : i64, tpu.core_type = #tpu.core_type<tc>, window_params = [{transform_indices = @transform_0, window_bounds = array<i64: 1, 72, 128>}, {pipeline_mode = #tpu.pipeline_mode<synchronous>, transform_indices = @transform_1, window_bounds = array<i64: 512, 72>}, {pipeline_mode = #tpu.pipeline_mode<synchronous>, transform_indices = @transform_2, window_bounds = array<i64: 8, 512>}, {pipeline_mode = #tpu.pipeline_mode<synchronous>, transform_indices = @transform_3, window_bounds = array<i64: 1, 1>}, {transform_indices = @transform_4, window_bounds = array<i64: 1, 1, 128>}]} {
    %c0 = arith.constant 0 : index
    %c0_0 = arith.constant 0 : index
    %0 = vector.load %arg3[%c0, %c0_0] : memref<512x72xbf16, #tpu.memory_space<vmem>>, vector<512x72xbf16>
    %c0_1 = arith.constant 0 : index
    %c0_2 = arith.constant 0 : index
    %c0_3 = arith.constant 0 : index
    %1 = vector.load %arg2[%c0_1, %c0_2, %c0_3] : memref<1x72x128xbf16, #tpu.memory_space<vmem>>, vector<1x72x128xbf16>
    %2 = vector.shape_cast %1 : vector<1x72x128xbf16> to vector<72x128xbf16>
    %cst = arith.constant dense<0.000000e+00> : vector<512x128xf32>
    %3 = tpu.matmul %0, %2, %cst {dimension_numbers = #tpu.dot_dimension_numbers<[1], [0], [0], [1], [0, 0, 1, 1], [], []>} : vector<512x72xbf16>, vector<72x128xbf16>, vector<512x128xf32> -> vector<512x128xf32>
    %cst_4 = arith.constant 0.000000e+00 : f32
    %4 = vector.broadcast %cst_4 : f32 to vector<512x128xf32>
    %5 = arith.maximumf %3, %4 : vector<512x128xf32>
    %c0_5 = arith.constant 0 : index
    %c0_6 = arith.constant 0 : index
    %6 = vector.load %arg4[%c0_5, %c0_6] : memref<8x512xbf16, #tpu.memory_space<vmem>>, vector<8x512xbf16>
    %7 = arith.truncf %5 : vector<512x128xf32> to vector<512x128xbf16>
    %cst_7 = arith.constant dense<0.000000e+00> : vector<8x128xf32>
    %8 = tpu.matmul %6, %7, %cst_7 {dimension_numbers = #tpu.dot_dimension_numbers<[1], [0], [0], [1], [0, 0, 1, 1], [], []>} : vector<8x512xbf16>, vector<512x128xbf16>, vector<8x128xf32> -> vector<8x128xf32>
    %9 = vector.extract_strided_slice %8 {offsets = [0, 0], sizes = [1, 128], strides = [1, 1]} : vector<8x128xf32> to vector<1x128xf32>
    %c0_8 = arith.constant 0 : index
    %c0_9 = arith.constant 0 : index
    %10 = vector.load %arg5[%c0_8, %c0_9] : memref<1x1xf32, #tpu.memory_space<vmem>>, vector<1x1xf32>
    %11 = vector.broadcast %10 : vector<1x1xf32> to vector<1x128xf32>
    %12 = arith.addf %9, %11 : vector<1x128xf32>
    %13 = vector.shape_cast %12 : vector<1x128xf32> to vector<1x1x128xf32>
    %c0_10 = arith.constant 0 : index
    %c0_11 = arith.constant 0 : index
    %c0_12 = arith.constant 0 : index
    %14 = vector.load %arg6[%c0_10, %c0_11, %c0_12] : memref<1x1x128xf32, #tpu.memory_space<vmem>>, vector<1x1x128xf32>
    tpu.vector_store %arg6[%c0_10, %c0_11, %c0_12], %13 {strides = array<i32>} : memref<1x1x128xf32, #tpu.memory_space<vmem>>, vector<1x1x128xf32>,
    return
  }
  func.func @transform_0(%arg0: i32, %arg1: i32) -> (i32, i32, i32) {
    %c0_i32 = arith.constant 0 : i32
    %c0_i32_0 = arith.constant 0 : i32
    return %arg0, %c0_i32, %arg1 : i32, i32, i32
  }
  func.func @transform_1(%arg0: i32, %arg1: i32) -> (i32, i32) {
    %c0_i32 = arith.constant 0 : i32
    %c0_i32_0 = arith.constant 0 : i32
    %c0_i32_1 = arith.constant 0 : i32
    return %c0_i32, %c0_i32_0 : i32, i32
  }
  func.func @transform_2(%arg0: i32, %arg1: i32) -> (i32, i32) {
    %c0_i32 = arith.constant 0 : i32
    %c0_i32_0 = arith.constant 0 : i32
    %c0_i32_1 = arith.constant 0 : i32
    return %c0_i32, %c0_i32_0 : i32, i32
  }
  func.func @transform_3(%arg0: i32, %arg1: i32) -> (i32, i32) {
    %c0_i32 = arith.constant 0 : i32
    %c0_i32_0 = arith.constant 0 : i32
    %c0_i32_1 = arith.constant 0 : i32
    return %c0_i32, %c0_i32_0 : i32, i32
  }
  func.func @transform_4(%arg0: i32, %arg1: i32) -> (i32, i32, i32) {
    %c0_i32 = arith.constant 0 : i32
    %c0_i32_0 = arith.constant 0 : i32
    return %arg0, %c0_i32, %arg1 : i32, i32, i32
  }
}

</mosaic_0001>

<llo_original>
// kernel: tpu_custom_call.1
$region0: #{tpu_custom_call.1}
  #allocation0 [shape = 'u32[]', space=smem, size = 0x4, offset = 0x4, fixed_abs, tag = 'smem constant byte address 0x4 - core index']
  #allocation1 [shape = 'u32[144,128]{1,0:T(1,128)}', space=vmem, size = 0x12000, scoped, tag = 'internal scratch']
  #allocation2 [shape = 'f32[1,1]{1,0:T(1,128)S(1)}', space=vmem, size = 0x200, scoped, tag = 'scoped memory for tpu_custom_call.1']
  %s0 = inlined_call_operand.vmem [shape: bf16[2,72,256], index: 0, kind: input, shape index: {}]
  %s1 = inlined_call_operand.vmem [shape: bf16[512,72], index: 1, kind: input, shape index: {}]
  %s2 = inlined_call_operand.vmem [shape: bf16[8,512], index: 2, kind: input, shape index: {}]
  %s3 = inlined_call_operand.<no memory space> [shape: f32[1,1], index: 3, kind: input, shape index: {}]
  %s4 = inlined_call_operand.hbm [shape: f32[2,1,256], index: 4, kind: output, shape index: {}]
  %s5 = sld [smem:[#allocation0]]
  $region90: #{tpu_custom_call.1} parent=0
    _
  %s7 = ssub.s32 1, %s5
  %s8 = scalar_select 0, %s7, %s5
  %v9 = vstv %s3
  %10 = vst [vmem:[#allocation2] sm:$0x1] %v9
  $region1: #{tpu_custom_call.1} parent=0
    #allocation3 [shape = 'u8[36864]{0}', space=vmem, size = 0x9000, scoped, tag = 'input window, operand 0']
    #allocation4 [shape = 'u8[1024]{0}', space=vmem, size = 0x400, scoped, tag = 'output window, operand 0']
    #allocation5 [shape = 's32[2]{0}', space=sflag, size = 0x8, scoped, tag = 'scoped memory for tpu_custom_call.1']
    %11 = vsyncpa [#allocation5], 0
    %s12 = scalar_lea.sflag [#allocation5], 1
    %13 = vsyncpa %s12, 0
    loop: start=0, step=1, limit=6
    $region2: #{tpu_custom_call.1} parent=1 // loop_pre_header
      _
    $region3: #{tpu_custom_call.1} parent=1 // loop_header
      %s15 = sphi 0, %s19
      %p16 = scmp.ge.s32.totalorder %s15, 6
      %s22 = sphi 0, %s34
      %s23 = sphi 0, %s30
      %s24 = sphi 0, %s22
      %s25 = sphi 0, %s23
      %s26 = sphi 0, %s24
      %s27 = sphi 0, %s25
      %s39 = sphi 0, %s41
      %s42 = sphi 0, %s39
      %s43 = sphi 0, %s42
      %s59 = sphi 0, %s43
      %s63 = sphi 0, %s63
      %s65 = sphi 0, %s63
      %s66 = sphi 0, %s65
      %s80 = sphi 0, %s66
      %s84 = sphi 0, %s84
      %s86 = sphi 0, %s84
      %s87 = sphi 0, %s86
      %s101 = sphi 0, %s87
      %s105 = sphi 0, %s105
      %s107 = sphi 0, %s105
      %s108 = sphi 0, %s107
      %s122 = sphi 0, %s108
      %s130 = sphi 0, %s132
      %s133 = sphi 0, %s130
      %s134 = sphi 0, %s133
      %s150 = sphi 0, %s134
    $region4: #{tpu_custom_call.1} parent=1 // loop_header_branch
      %18 = sbr.rel (%p16) target = $region8
    $region5: #{tpu_custom_call.1} parent=1 // loop_body
      %s20 = ssub.s32 %s15, 1
      %s21 = ssub.s32 %s15, 2
      %s28 = sadd.s32 1, %s23
      %p29 = scmp.ge.s32.totalorder %s28, 2
      %s30 = scalar_select %p29, 0, %s28
      %s31 = sadd.s32 1, %s22
      %s32 = scalar_select %p29, %s31, %s22
      %p33 = scmp.ge.s32.totalorder %s32, 2
      %s34 = scalar_select %p33, 0, %s32
      %s35 = ssub.s32 %s22, %s34
      %s36 = ssub.s32 %s23, %s30
      %s37 = sor.u32 %s35, %s36
      %p38 = scmp.eq.s32.totalorder %s37, 0
      %s40 = sadd.s32 %s39, 1
      %s41 = scalar_select %p38, %s39, %s40
      %p44 = pneg %p38
      %p45 = scmp.eq.s32.totalorder %s15, 3
      %p46 = por %p44, %p45
      %p47 = scmp.ne.s32.totalorder %s39, %s42
      %p48 = scmp.eq.s32.totalorder %s15, 0
      %p49 = por %p47, %p48
      %p50 = scmp.ne.s32.totalorder %s39, %s42
      %p51 = scmp.eq.s32.totalorder %s20, 3
      %p52 = por %p50, %p51
      %p53 = scmp.ne.s32.totalorder %s42, %s43
      %p54 = scmp.eq.s32.totalorder %s20, 0
      %p55 = por %p53, %p54
      %p56 = scmp.ne.s32.totalorder %s42, %s43
      %p57 = scmp.eq.s32.totalorder %s21, 3
      %p58 = por %p56, %p57
      %p60 = scmp.ne.s32.totalorder %s43, %s59
      %p61 = scmp.eq.s32.totalorder %s21, 0
      %p62 = por %p60, %p61
      %s64 = sadd.s32 %s63, 1
      %p67 = scmp.eq.s32.totalorder %s15, 3
      %p68 = scmp.ne.s32.totalorder %s63, %s65
      %p69 = scmp.eq.s32.totalorder %s15, 0
      %p70 = por %p68, %p69
      %p71 = scmp.ne.s32.totalorder %s63, %s65
      %p72 = scmp.eq.s32.totalorder %s20, 3
      %p73 = por %p71, %p72
      %p74 = scmp.ne.s32.totalorder %s65, %s66
      %p75 = scmp.eq.s32.totalorder %s20, 0
      %p76 = por %p74, %p75
      %p77 = scmp.ne.s32.totalorder %s65, %s66
      %p78 = scmp.eq.s32.totalorder %s21, 3
      %p79 = por %p77, %p78
      %p81 = scmp.ne.s32.totalorder %s66, %s80
      %p82 = scmp.eq.s32.totalorder %s21, 0
      %p83 = por %p81, %p82
      %s85 = sadd.s32 %s84, 1
      %p88 = scmp.eq.s32.totalorder %s15, 3
      %p89 = scmp.ne.s32.totalorder %s84, %s86
      %p90 = scmp.eq.s32.totalorder %s15, 0
      %p91 = por %p89, %p90
      %p92 = scmp.ne.s32.totalorder %s84, %s86
      %p93 = scmp.eq.s32.totalorder %s20, 3
      %p94 = por %p92, %p93
      %p95 = scmp.ne.s32.totalorder %s86, %s87
      %p96 = scmp.eq.s32.totalorder %s20, 0
      %p97 = por %p95, %p96
      %p98 = scmp.ne.s32.totalorder %s86, %s87
      %p99 = scmp.eq.s32.totalorder %s21, 3
      %p100 = por %p98, %p99
      %p102 = scmp.ne.s32.totalorder %s87, %s101
      %p103 = scmp.eq.s32.totalorder %s21, 0
      %p104 = por %p102, %p103
      %s106 = sadd.s32 %s105, 1
      %p109 = scmp.eq.s32.totalorder %s15, 3
      %p110 = scmp.ne.s32.totalorder %s105, %s107
      %p111 = scmp.eq.s32.totalorder %s15, 0
      %p112 = por %p110, %p111
      %p113 = scmp.ne.s32.totalorder %s105, %s107
      %p114 = scmp.eq.s32.totalorder %s20, 3
      %p115 = por %p113, %p114
      %p116 = scmp.ne.s32.totalorder %s107, %s108
      %p117 = scmp.eq.s32.totalorder %s20, 0
      %p118 = por %p116, %p117
      %p119 = scmp.ne.s32.totalorder %s107, %s108
      %p120 = scmp.eq.s32.totalorder %s21, 3
      %p121 = por %p119, %p120
      %p123 = scmp.ne.s32.totalorder %s108, %s122
      %p124 = scmp.eq.s32.totalorder %s21, 0
      %p125 = por %p123, %p124
      %s126 = ssub.s32 %s22, %s34
      %s127 = ssub.s32 %s23, %s30
      %s128 = sor.u32 %s126, %s127
      %p129 = scmp.eq.s32.totalorder %s128, 0
      %s131 = sadd.s32 %s130, 1
      %s132 = scalar_select %p129, %s130, %s131
      %p135 = pneg %p129
      %p136 = scmp.eq.s32.totalorder %s15, 3
      %p137 = por %p135, %p136
      %p138 = scmp.ne.s32.totalorder %s130, %s133
      %p139 = scmp.eq.s32.totalorder %s15, 0
      %p140 = por %p138, %p139
      %p141 = scmp.ne.s32.totalorder %s130, %s133
      %p142 = scmp.eq.s32.totalorder %s20, 3
      %p143 = por %p141, %p142
      %p144 = scmp.ne.s32.totalorder %s133, %s134
      %p145 = scmp.eq.s32.totalorder %s20, 0
      %p146 = por %p144, %p145
      %p147 = scmp.ne.s32.totalorder %s133, %s134
      %p148 = scmp.eq.s32.totalorder %s21, 3
      %p149 = por %p147, %p148
      %p151 = scmp.ne.s32.totalorder %s134, %s150
      %p152 = scmp.eq.s32.totalorder %s21, 0
      %p153 = por %p151, %p152
      %p154 = scmp.le.s32.totalorder 1, %s15
      %p155 = scmp.lt.s32.totalorder %s15, 5
      %p156 = pnand %p154, %p155
      %p157 = pneg %p156
      // Predicated region
      $region9: #{tpu_custom_call.1} parent=5 // pred_check
        _
      $region10: #{tpu_custom_call.1} parent=5 // pred_check_branch
        %159 = sbr.rel (%p156) target = $region12
      $region11: #{tpu_custom_call.1} parent=5 // pred_region
        %s160 = ssub.s32 %s15, 1
        // Predicated region
        $region13: #{tpu_custom_call.1} parent=11 // pred_check
          %p161 = pneg %p76
        $region14: #{tpu_custom_call.1} parent=11 // pred_check_branch
          %163 = sbr.rel (%p161) target = $region16
        $region15: #{tpu_custom_call.1} parent=11 // pred_region
          _
        $region16: #{tpu_custom_call.1} parent=11 // pred_fallthru
          _
        // Predicated region
        $region17: #{tpu_custom_call.1} parent=11 // pred_check
          %p164 = pneg %p97
        $region18: #{tpu_custom_call.1} parent=11 // pred_check_branch
          %166 = sbr.rel (%p164) target = $region20
        $region19: #{tpu_custom_call.1} parent=11 // pred_region
          _
        $region20: #{tpu_custom_call.1} parent=11 // pred_fallthru
          _
        // Predicated region
        $region21: #{tpu_custom_call.1} parent=11 // pred_check
          %p167 = pneg %p118
        $region22: #{tpu_custom_call.1} parent=11 // pred_check_branch
          %169 = sbr.rel (%p167) target = $region24
        $region23: #{tpu_custom_call.1} parent=11 // pred_region
          _
        $region24: #{tpu_custom_call.1} parent=11 // pred_fallthru
          _
      $region12: #{tpu_custom_call.1} parent=5 // pred_fallthru
        _
      %p170 = scmp.lt.s32.totalorder %s15, 4
      // Predicated region
      $region25: #{tpu_custom_call.1} parent=5 // pred_check
        %p171 = pneg %p170
      $region26: #{tpu_custom_call.1} parent=5 // pred_check_branch
        %173 = sbr.rel (%p171) target = $region28
      $region27: #{tpu_custom_call.1} parent=5 // pred_region
        // Predicated region
        $region29: #{tpu_custom_call.1} parent=27 // pred_check
          %p174 = pneg %p49
        $region30: #{tpu_custom_call.1} parent=27 // pred_check_branch
          %176 = sbr.rel (%p174) target = $region32
        $region31: #{tpu_custom_call.1} parent=27 // pred_region
          %s177 = sand.u32 %s39, 1
          %s178 = sand.u32 %s39, 1
          %s179 = smul.addr %s178, 36
          %s180 = scalar_lea.vmem [#allocation3], %s179
          %s181 = smul.addr %s22, 18
          %s182 = sadd.s32 %s23, %s181
          %s183 = smul.addr %s182, 4
          %s184 = scalar_lea.vmem %s0, %s183
          // Predicated region
          $region33: #{tpu_custom_call.1} parent=31 // pred_check
            _
          $region34: #{tpu_custom_call.1} parent=31 // pred_check_branch
            %186 = sbr.rel (0) target = $region36
          $region35: #{tpu_custom_call.1} parent=31 // pred_region
            // Predicated region
            $region37: #{tpu_custom_call.1} parent=35 // pred_check
              _
            $region38: #{tpu_custom_call.1} parent=35 // pred_check_branch
              %188 = sbr.rel target = $region40
            $region39: #{tpu_custom_call.1} parent=35 // pred_region
              // Predicated region
              $region52: #{tpu_custom_call.1} parent=39 // pred_check
                _
              $region53: #{tpu_custom_call.1} parent=39 // pred_check_branch
                %219 = sbr.rel (0) target = $region55
              $region54: #{tpu_custom_call.1} parent=39 // pred_region
                loop: start=0, step=1, limit=1
                $region56: #{tpu_custom_call.1} parent=54 // loop_pre_header
                  _
                $region57: #{tpu_custom_call.1} parent=54 // loop_header
                  %s221 = sphi 0, %s225
                  %p222 = scmp.ge.s32.totalorder %s221, 1
                  %s226 = sphi %s184, %s184
                  %s227 = sphi %s180, %s180
                $region58: #{tpu_custom_call.1} parent=54 // loop_header_branch
                  %224 = sbr.rel (%p222) target = $region62
                $region59: #{tpu_custom_call.1} parent=54 // loop_body
                  _
                $region60: #{tpu_custom_call.1} parent=54 // loop_footer
                  %s225 = sadd.s32 1, %s221
                $region61: #{tpu_custom_call.1} parent=54 // loop_footer_branch
                  %220 = sbr.rel target = $region57
                $region62: #{tpu_custom_call.1} parent=54 // loop_exit
                  _
                loop: start=0, step=1, limit=1
                $region63: #{tpu_custom_call.1} parent=54 // loop_pre_header
                  _
                $region64: #{tpu_custom_call.1} parent=54 // loop_header
                  %s230 = sphi 0, %s234
                  %p231 = scmp.ge.s32.totalorder %s230, 1
                  %s235 = sphi %s184, %s184
                  %s236 = sphi %s180, %s180
                $region65: #{tpu_custom_call.1} parent=54 // loop_header_branch
                  %233 = sbr.rel (%p231) target = $region69
                $region66: #{tpu_custom_call.1} parent=54 // loop_body
                  %v237 = vld [vmem:[%s235] sm:$0xf]
                  %238 = vst [vmem:[%s236] sm:$0xf] %v237
                  %v239 = vld [vmem:[%s235 + $0x8] sm:$0xf]
                  %240 = vst [vmem:[%s236 + $0x4] sm:$0xf] %v239
                  %v241 = vld [vmem:[%s235 + $0x10] sm:$0xf]
                  %242 = vst [vmem:[%s236 + $0x8] sm:$0xf] %v241
                  %v243 = vld [vmem:[%s235 + $0x18] sm:$0xf]
                  %244 = vst [vmem:[%s236 + $0xc] sm:$0xf] %v243
                  %v245 = vld [vmem:[%s235 + $0x20] sm:$0xf]
                  %246 = vst [vmem:[%s236 + $0x10] sm:$0xf] %v245
                  %v247 = vld [vmem:[%s235 + $0x28] sm:$0xf]
                  %248 = vst [vmem:[%s236 + $0x14] sm:$0xf] %v247
                  %v249 = vld [vmem:[%s235 + $0x30] sm:$0xf]
                  %250 = vst [vmem:[%s236 + $0x18] sm:$0xf] %v249
                  %v251 = vld [vmem:[%s235 + $0x38] sm:$0xf]
                  %252 = vst [vmem:[%s236 + $0x1c] sm:$0xf] %v251
                  %v253 = vld [vmem:[%s235 + $0x40] sm:$0xf]
                  %254 = vst [vmem:[%s236 + $0x20] sm:$0xf] %v253
                $region67: #{tpu_custom_call.1} parent=54 // loop_footer
                  %s234 = sadd.s32 1, %s230
                $region68: #{tpu_custom_call.1} parent=54 // loop_footer_branch
                  %229 = sbr.rel target = $region64
                $region69: #{tpu_custom_call.1} parent=54 // loop_exit
                  _
              $region55: #{tpu_custom_call.1} parent=39 // pred_fallthru
                _
            $region40: #{tpu_custom_call.1} parent=35 // pred_fallthru
              _
            // Predicated region
            $region41: #{tpu_custom_call.1} parent=35 // pred_check
              _
            $region42: #{tpu_custom_call.1} parent=35 // pred_check_branch
              %190 = sbr.rel (0) target = $region44
            $region43: #{tpu_custom_call.1} parent=35 // pred_region
              loop: start=0, step=1, limit=1
              $region45: #{tpu_custom_call.1} parent=43 // loop_pre_header
                _
              $region46: #{tpu_custom_call.1} parent=43 // loop_header
                %s193 = sphi 0, %s197
                %p194 = scmp.ge.s32.totalorder %s193, 1
                %s198 = sphi %s184, %s184
                %s199 = sphi %s180, %s180
              $region47: #{tpu_custom_call.1} parent=43 // loop_header_branch
                %196 = sbr.rel (%p194) target = $region51
              $region48: #{tpu_custom_call.1} parent=43 // loop_body
                %v200 = vld [vmem:[%s198] sm:$0xf]
                %201 = vst [vmem:[%s199] sm:$0xf] %v200
                %v202 = vld [vmem:[%s198 + $0x8] sm:$0xf]
                %203 = vst [vmem:[%s199 + $0x4] sm:$0xf] %v202
                %v204 = vld [vmem:[%s198 + $0x10] sm:$0xf]
                %205 = vst [vmem:[%s199 + $0x8] sm:$0xf] %v204
                %v206 = vld [vmem:[%s198 + $0x18] sm:$0xf]
                %207 = vst [vmem:[%s199 + $0xc] sm:$0xf] %v206
                %v208 = vld [vmem:[%s198 + $0x20] sm:$0xf]
                %209 = vst [vmem:[%s199 + $0x10] sm:$0xf] %v208
                %v210 = vld [vmem:[%s198 + $0x28] sm:$0xf]
                %211 = vst [vmem:[%s199 + $0x14] sm:$0xf] %v210
                %v212 = vld [vmem:[%s198 + $0x30] sm:$0xf]
                %213 = vst [vmem:[%s199 + $0x18] sm:$0xf] %v212
                %v214 = vld [vmem:[%s198 + $0x38] sm:$0xf]
                %215 = vst [vmem:[%s199 + $0x1c] sm:$0xf] %v214
                %v216 = vld [vmem:[%s198 + $0x40] sm:$0xf]
                %217 = vst [vmem:[%s199 + $0x20] sm:$0xf] %v216
              $region49: #{tpu_custom_call.1} parent=43 // loop_footer
                %s197 = sadd.s32 1, %s193
              $region50: #{tpu_custom_call.1} parent=43 // loop_footer_branch
                %192 = sbr.rel target = $region46
              $region51: #{tpu_custom_call.1} parent=43 // loop_exit
                _
            $region44: #{tpu_custom_call.1} parent=35 // pred_fallthru
              _
          $region36: #{tpu_custom_call.1} parent=31 // pred_fallthru
            _
          %255 = vnop
        $region32: #{tpu_custom_call.1} parent=27 // pred_fallthru
          _
      $region28: #{tpu_custom_call.1} parent=5 // pred_fallthru
        _
      %p256 = scmp.le.s32.totalorder 1, %s15
      %p257 = scmp.lt.s32.totalorder %s15, 5
      %p258 = pnand %p256, %p257
      %p259 = pneg %p258
      // Predicated region
      $region70: #{tpu_custom_call.1} parent=5 // pred_check
        _
      $region71: #{tpu_custom_call.1} parent=5 // pred_check_branch
        %261 = sbr.rel (%p258) target = $region73
      $region72: #{tpu_custom_call.1} parent=5 // pred_region
        %s262 = ssub.s32 %s15, 1
        %s263 = sand.u32 %s42, 1
        %s264 = sand.u32 %s42, 1
        %s265 = smul.addr %s264, 36
        %s266 = scalar_lea.vmem [#allocation3], %s265
        // Predicated region
        $region74: #{tpu_custom_call.1} parent=72 // pred_check
          %p267 = pneg %p55
        $region75: #{tpu_custom_call.1} parent=72 // pred_check_branch
          %269 = sbr.rel (%p267) target = $region77
        $region76: #{tpu_custom_call.1} parent=72 // pred_region
          _
        $region77: #{tpu_custom_call.1} parent=72 // pred_fallthru
          _
        %s270 = sand.u32 %s42, 1
        %s271 = sand.u32 %s42, 1
        %s272 = smul.addr %s271, 36
        %s273 = scalar_lea.vmem [#allocation3], %s272
        %p274 = pneg %p55
        %p275 = pneg %p52
        %p276 = pneg %p76
        %p277 = pneg %p73
        %p278 = pneg %p97
        %p279 = pneg %p94
        %p280 = pneg %p118
        %p281 = pneg %p115
        %p282 = pneg %p146
        %p283 = pneg %p143
        %s284 = sand.u32 %s133, 1
        %s285 = scalar_lea.sflag [#allocation5], %s284
        %s286 = sand.u32 %s133, 1
        %s287 = scalar_lea.vmem [#allocation4], %s286
        %v289 = vld [vmem:[%s1] sm:$0xf]
        %v290 = vld [vmem:[%s1 + $0x4] sm:$0xf]
        %v291 = vld [vmem:[%s1 + $0x8] sm:$0xf]
        %v292 = vld [vmem:[%s1 + $0xc] sm:$0xf]
        %v293 = vld [vmem:[%s1 + $0x10] sm:$0xf]
        %v294 = vld [vmem:[%s1 + $0x14] sm:$0xf]
        %v295 = vld [vmem:[%s1 + $0x18] sm:$0xf]
        %v296 = vld [vmem:[%s1 + $0x1c] sm:$0xf]
        %v297 = vld [vmem:[%s1 + $0x20] sm:$0xf]
        %v298 = vld [vmem:[%s1 + $0x24] sm:$0xf]
        %v299 = vld [vmem:[%s1 + $0x28] sm:$0xf]
        %v300 = vld [vmem:[%s1 + $0x2c] sm:$0xf]
        %v301 = vld [vmem:[%s1 + $0x30] sm:$0xf]
        %v302 = vld [vmem:[%s1 + $0x34] sm:$0xf]
        %v303 = vld [vmem:[%s1 + $0x38] sm:$0xf]
        %v304 = vld [vmem:[%s1 + $0x3c] sm:$0xf]
        %v305 = vld [vmem:[%s1 + $0x40] sm:$0xf]
        %v306 = vld [vmem:[%s1 + $0x44] sm:$0xf]
        %v307 = vld [vmem:[%s1 + $0x48] sm:$0xf]
        %v308 = vld [vmem:[%s1 + $0x4c] sm:$0xf]
        %v309 = vld [vmem:[%s1 + $0x50] sm:$0xf]
        %v310 = vld [vmem:[%s1 + $0x54] sm:$0xf]
        %v311 = vld [vmem:[%s1 + $0x58] sm:$0xf]
        %v312 = vld [vmem:[%s1 + $0x5c] sm:$0xf]
        %v313 = vld [vmem:[%s1 + $0x60] sm:$0xf]
        %v314 = vld [vmem:[%s1 + $0x64] sm:$0xf]
        %v315 = vld [vmem:[%s1 + $0x68] sm:$0xf]
        %v316 = vld [vmem:[%s1 + $0x6c] sm:$0xf]
        %v317 = vld [vmem:[%s1 + $0x70] sm:$0xf]
        %v318 = vld [vmem:[%s1 + $0x74] sm:$0xf]
        %v319 = vld [vmem:[%s1 + $0x78] sm:$0xf]
        %v320 = vld [vmem:[%s1 + $0x7c] sm:$0xf]
        %v321 = vld [vmem:[%s1 + $0x80] sm:$0xf]
        %v322 = vld [vmem:[%s1 + $0x84] sm:$0xf]
        %v323 = vld [vmem:[%s1 + $0x88] sm:$0xf]
        %v324 = vld [vmem:[%s1 + $0x8c] sm:$0xf]
        %v325 = vld [vmem:[%s1 + $0x90] sm:$0xf]
        %v326 = vld [vmem:[%s1 + $0x94] sm:$0xf]
        %v327 = vld [vmem:[%s1 + $0x98] sm:$0xf]
        %v328 = vld [vmem:[%s1 + $0x9c] sm:$0xf]
        %v329 = vld [vmem:[%s1 + $0xa0] sm:$0xf]
        %v330 = vld [vmem:[%s1 + $0xa4] sm:$0xf]
        %v331 = vld [vmem:[%s1 + $0xa8] sm:$0xf]
        %v332 = vld [vmem:[%s1 + $0xac] sm:$0xf]
        %v333 = vld [vmem:[%s1 + $0xb0] sm:$0xf]
        %v334 = vld [vmem:[%s1 + $0xb4] sm:$0xf]
        %v335 = vld [vmem:[%s1 + $0xb8] sm:$0xf]
        %v336 = vld [vmem:[%s1 + $0xbc] sm:$0xf]
        %v337 = vld [vmem:[%s1 + $0xc0] sm:$0xf]
        %v338 = vld [vmem:[%s1 + $0xc4] sm:$0xf]
        %v339 = vld [vmem:[%s1 + $0xc8] sm:$0xf]
        %v340 = vld [vmem:[%s1 + $0xcc] sm:$0xf]
        %v341 = vld [vmem:[%s1 + $0xd0] sm:$0xf]
        %v342 = vld [vmem:[%s1 + $0xd4] sm:$0xf]
        %v343 = vld [vmem:[%s1 + $0xd8] sm:$0xf]
        %v344 = vld [vmem:[%s1 + $0xdc] sm:$0xf]
        %v345 = vld [vmem:[%s1 + $0xe0] sm:$0xf]
        %v346 = vld [vmem:[%s1 + $0xe4] sm:$0xf]
        %v347 = vld [vmem:[%s1 + $0xe8] sm:$0xf]
        %v348 = vld [vmem:[%s1 + $0xec] sm:$0xf]
        %v349 = vld [vmem:[%s1 + $0xf0] sm:$0xf]
        %v350 = vld [vmem:[%s1 + $0xf4] sm:$0xf]
        %v351 = vld [vmem:[%s1 + $0xf8] sm:$0xf]
        %v352 = vld [vmem:[%s1 + $0xfc] sm:$0xf]
        %v353 = vld [vmem:[%s266] sm:$0xf]
        %v354 = vld [vmem:[%s266 + $0x4] sm:$0xf]
        %v355 = vld [vmem:[%s266 + $0x8] sm:$0xf]
        %v356 = vld [vmem:[%s266 + $0xc] sm:$0xf]
        %v357 = vld [vmem:[%s266 + $0x10] sm:$0xf]
        %v358 = vld [vmem:[%s266 + $0x14] sm:$0xf]
        %v359 = vld [vmem:[%s266 + $0x18] sm:$0xf]
        %v360 = vld [vmem:[%s266 + $0x1c] sm:$0xf]
        %v361 = vld [vmem:[%s266 + $0x20] sm:$0xf]
        %v426 = vunpack.c.l.b16 %v289
        %v427 = vunpack.c.l.b16 %v290
        %v428 = vunpack.c.l.b16 %v291
        %v429 = vunpack.c.l.b16 %v292
        %v430 = vunpack.c.l.b16 %v293
        %v431 = vunpack.c.l.b16 %v294
        %v432 = vunpack.c.l.b16 %v295
        %v433 = vunpack.c.l.b16 %v296
        %v434 = vunpack.c.l.b16 %v297
        %v435 = vunpack.c.l.b16 %v298
        %v436 = vunpack.c.l.b16 %v299
        %v437 = vunpack.c.l.b16 %v300
        %v438 = vunpack.c.l.b16 %v301
        %v439 = vunpack.c.l.b16 %v302
        %v440 = vunpack.c.l.b16 %v303
        %v441 = vunpack.c.l.b16 %v304
        %v442 = vunpack.c.l.b16 %v305
        %v443 = vunpack.c.l.b16 %v306
        %v444 = vunpack.c.l.b16 %v307
        %v445 = vunpack.c.l.b16 %v308
        %v446 = vunpack.c.l.b16 %v309
        %v447 = vunpack.c.l.b16 %v310
        %v448 = vunpack.c.l.b16 %v311
        %v449 = vunpack.c.l.b16 %v312
        %v450 = vunpack.c.l.b16 %v313
        %v451 = vunpack.c.l.b16 %v314
        %v452 = vunpack.c.l.b16 %v315
        %v453 = vunpack.c.l.b16 %v316
        %v454 = vunpack.c.l.b16 %v317
        %v455 = vunpack.c.l.b16 %v318
        %v456 = vunpack.c.l.b16 %v319
        %v457 = vunpack.c.l.b16 %v320
        %v458 = vunpack.c.l.b16 %v321
        %v459 = vunpack.c.l.b16 %v322
        %v460 = vunpack.c.l.b16 %v323
        %v461 = vunpack.c.l.b16 %v324
        %v462 = vunpack.c.l.b16 %v325
        %v463 = vunpack.c.l.b16 %v326
        %v464 = vunpack.c.l.b16 %v327
        %v465 = vunpack.c.l.b16 %v328
        %v466 = vunpack.c.l.b16 %v329
        %v467 = vunpack.c.l.b16 %v330
        %v468 = vunpack.c.l.b16 %v331
        %v469 = vunpack.c.l.b16 %v332
        %v470 = vunpack.c.l.b16 %v333
        %v471 = vunpack.c.l.b16 %v334
        %v472 = vunpack.c.l.b16 %v335
        %v473 = vunpack.c.l.b16 %v336
        %v474 = vunpack.c.l.b16 %v337
        %v475 = vunpack.c.l.b16 %v338
        %v476 = vunpack.c.l.b16 %v339
        %v477 = vunpack.c.l.b16 %v340
        %v478 = vunpack.c.l.b16 %v341
        %v479 = vunpack.c.l.b16 %v342
        %v480 = vunpack.c.l.b16 %v343
        %v481 = vunpack.c.l.b16 %v344
        %v482 = vunpack.c.l.b16 %v345
        %v483 = vunpack.c.l.b16 %v346
        %v484 = vunpack.c.l.b16 %v347
        %v485 = vunpack.c.l.b16 %v348
        %v486 = vunpack.c.l.b16 %v349
        %v487 = vunpack.c.l.b16 %v350
        %v488 = vunpack.c.l.b16 %v351
        %v489 = vunpack.c.l.b16 %v352
        %v490 = vpack.c.b16 %v427, %v426
        %v491 = vpack.c.b16 %v429, %v428
        %v492 = vpack.c.b16 %v431, %v430
        %v493 = vpack.c.b16 %v433, %v432
        %v494 = vpack.c.b16 %v435, %v434
        %v495 = vpack.c.b16 %v437, %v436
        %v496 = vpack.c.b16 %v439, %v438
        %v497 = vpack.c.b16 %v441, %v440
        %v498 = vpack.c.b16 %v443, %v442
        %v499 = vpack.c.b16 %v445, %v444
        %v500 = vpack.c.b16 %v447, %v446
        %v501 = vpack.c.b16 %v449, %v448
        %v502 = vpack.c.b16 %v451, %v450
        %v503 = vpack.c.b16 %v453, %v452
        %v504 = vpack.c.b16 %v455, %v454
        %v505 = vpack.c.b16 %v457, %v456
        %v506 = vpack.c.b16 %v459, %v458
        %v507 = vpack.c.b16 %v461, %v460
        %v508 = vpack.c.b16 %v463, %v462
        %v509 = vpack.c.b16 %v465, %v464
        %v510 = vpack.c.b16 %v467, %v466
        %v511 = vpack.c.b16 %v469, %v468
        %v512 = vpack.c.b16 %v471, %v470
        %v513 = vpack.c.b16 %v473, %v472
        %v514 = vpack.c.b16 %v475, %v474
        %v515 = vpack.c.b16 %v477, %v476
        %v516 = vpack.c.b16 %v479, %v478
        %v517 = vpack.c.b16 %v481, %v480
        %v518 = vpack.c.b16 %v483, %v482
        %v519 = vpack.c.b16 %v485, %v484
        %v520 = vpack.c.b16 %v487, %v486
        %v521 = vpack.c.b16 %v489, %v488
        %v531 = vunpack.c.l.b16 %v353
        %v532 = vunpack.c.l.b16 %v354
        %v533 = vunpack.c.l.b16 %v355
        %v534 = vunpack.c.l.b16 %v356
        %v535 = vunpack.c.l.b16 %v357
        %v536 = vunpack.c.l.b16 %v358
        %v537 = vunpack.c.l.b16 %v359
        %v538 = vunpack.c.l.b16 %v360
        %v539 = vunpack.c.l.b16 %v361
        %v540 = vpack.c.b16 %v532, %v531
        %v541 = vpack.c.b16 %v534, %v533
        %v542 = vpack.c.b16 %v536, %v535
        %v543 = vpack.c.b16 %v538, %v537
        %v544 = vpack.c.b16 %v539, %v539
        %vm549 = vcmask 588800
        %v551 = vsel %vm549, %v490, 0
        %v554 = vsel %vm549, %v491, 0
        %v557 = vsel %vm549, %v492, 0
        %v560 = vsel %vm549, %v493, 0
        %v563 = vsel %vm549, %v494, 0
        %v566 = vsel %vm549, %v495, 0
        %v569 = vsel %vm549, %v496, 0
        %v572 = vsel %vm549, %v497, 0
        %v575 = vsel %vm549, %v498, 0
        %v578 = vsel %vm549, %v499, 0
        %v581 = vsel %vm549, %v500, 0
        %v584 = vsel %vm549, %v501, 0
        %v587 = vsel %vm549, %v502, 0
        %v590 = vsel %vm549, %v503, 0
        %v593 = vsel %vm549, %v504, 0
        %v596 = vsel %vm549, %v505, 0
        %v599 = vsel %vm549, %v506, 0
        %v602 = vsel %vm549, %v507, 0
        %v605 = vsel %vm549, %v508, 0
        %v608 = vsel %vm549, %v509, 0
        %v611 = vsel %vm549, %v510, 0
        %v614 = vsel %vm549, %v511, 0
        %v617 = vsel %vm549, %v512, 0
        %v620 = vsel %vm549, %v513, 0
        %v623 = vsel %vm549, %v514, 0
        %v626 = vsel %vm549, %v515, 0
        %v629 = vsel %vm549, %v516, 0
        %v632 = vsel %vm549, %v517, 0
        %v635 = vsel %vm549, %v518, 0
        %v638 = vsel %vm549, %v519, 0
        %v641 = vsel %vm549, %v520, 0
        %v644 = vsel %vm549, %v521, 0
        %vm646 = vcmask 1043456
        %v648 = vsel %vm646, %v544, 0
        %650 = vmatprep.subr.bf16.mxu0 0
        %651 = vmatpush1.bf16.msra.mxu0 %v540
        %652 = vmatprep.subr.bf16.mxu0 0
        %653 = vmatpush1.bf16.msra.mxu0 %v541
        %654 = vmatprep.subr.bf16.mxu0 0
        %655 = vmatpush1.bf16.msra.mxu0 %v542
        %656 = vmatprep.subr.bf16.mxu0 0
        %657 = vmatpush1.bf16.msra.mxu0 %v543
        %658 = vmatprep.subr.bf16.mxu0 0
        %659 = vmatpush1.bf16.msra.mxu0 %v648
        %660 = vmatprep.subr.bf16.mxu0 0
        %661 = vmatpush1.bf16.msra.mxu0 0
        %662 = vmatprep.subr.bf16.mxu0 0
        %663 = vmatpush1.bf16.msra.mxu0 0
        %664 = vmatprep.subr.bf16.mxu0 0
        %665 = vmatpush1.bf16.msra.mxu0 0
        %666 = vmatprep.subr.bf16.mxu0 0
        %667 = vmatpush1.bf16.msra.mxu0 0
        %668 = vmatprep.subr.bf16.mxu0 0
        %669 = vmatpush1.bf16.msra.mxu0 0
        %670 = vmatprep.subr.bf16.mxu0 0
        %671 = vmatpush1.bf16.msra.mxu0 0
        %672 = vmatprep.subr.bf16.mxu0 0
        %673 = vmatpush1.bf16.msra.mxu0 0
        %674 = vmatprep.subr.bf16.mxu0 0
        %675 = vmatpush1.bf16.msra.mxu0 0
        %676 = vmatprep.subr.bf16.mxu0 0
        %677 = vmatpush1.bf16.msra.mxu0 0
        %678 = vmatprep.subr.bf16.mxu0 0
        %679 = vmatpush1.bf16.msra.mxu0 0
        %680 = vmatprep.subr.bf16.mxu0 0
        %681 = vmatpush1.bf16.msra.mxu0 0
        %682 = vmatprep.mubr.bf16.mxu0 0
        %683 = vmatmul.mubr.bf16.gmra.mrb[0].mxu0 %v551
        %v684 = vpop.f32.mrb[0].mxu0
        %v685 = vadd.f32 0.0, %v684
        %v686 = vpop.f32.mrb[0].mxu0
        %v687 = vpop.f32.mrb[0].mxu0
        %v688 = vadd.f32 0.0, %v687
        %v689 = vpop.f32.mrb[0].mxu0
        %690 = vmatprep.mubr.bf16.mxu0 0
        %691 = vmatmul.mubr.bf16.gmra.mrb[0].mxu0 %v554
        %v692 = vpop.f32.mrb[0].mxu0
        %v693 = vadd.f32 0.0, %v692
        %v694 = vpop.f32.mrb[0].mxu0
        %v695 = vpop.f32.mrb[0].mxu0
        %v696 = vadd.f32 0.0, %v695
        %v697 = vpop.f32.mrb[0].mxu0
        %698 = vmatprep.mubr.bf16.mxu0 0
        %699 = vmatmul.mubr.bf16.gmra.mrb[0].mxu0 %v557
        %v700 = vpop.f32.mrb[0].mxu0
        %v701 = vadd.f32 0.0, %v700
        %v702 = vpop.f32.mrb[0].mxu0
        %v703 = vpop.f32.mrb[0].mxu0
        %v704 = vadd.f32 0.0, %v703
        %v705 = vpop.f32.mrb[0].mxu0
        %706 = vmatprep.mubr.bf16.mxu0 0
        %707 = vmatmul.mubr.bf16.gmra.mrb[0].mxu0 %v560
        %v708 = vpop.f32.mrb[0].mxu0
        %v709 = vadd.f32 0.0, %v708
        %v710 = vpop.f32.mrb[0].mxu0
        %v711 = vpop.f32.mrb[0].mxu0
        %v712 = vadd.f32 0.0, %v711
        %v713 = vpop.f32.mrb[0].mxu0
        %714 = vmatprep.mubr.bf16.mxu0 0
        %715 = vmatmul.mubr.bf16.gmra.mrb[0].mxu0 %v563
        %v716 = vpop.f32.mrb[0].mxu0
        %v717 = vadd.f32 0.0, %v716
        %v718 = vpop.f32.mrb[0].mxu0
        %v719 = vpop.f32.mrb[0].mxu0
        %v720 = vadd.f32 0.0, %v719
        %v721 = vpop.f32.mrb[0].mxu0
        %722 = vmatprep.mubr.bf16.mxu0 0
        %723 = vmatmul.mubr.bf16.gmra.mrb[0].mxu0 %v566
        %v724 = vpop.f32.mrb[0].mxu0
        %v725 = vadd.f32 0.0, %v724
        %v726 = vpop.f32.mrb[0].mxu0
        %v727 = vpop.f32.mrb[0].mxu0
        %v728 = vadd.f32 0.0, %v727
        %v729 = vpop.f32.mrb[0].mxu0
        %730 = vmatprep.mubr.bf16.mxu0 0
        %731 = vmatmul.mubr.bf16.gmra.mrb[0].mxu0 %v569
        %v732 = vpop.f32.mrb[0].mxu0
        %v733 = vadd.f32 0.0, %v732
        %v734 = vpop.f32.mrb[0].mxu0
        %v735 = vpop.f32.mrb[0].mxu0
        %v736 = vadd.f32 0.0, %v735
        %v737 = vpop.f32.mrb[0].mxu0
        %738 = vmatprep.mubr.bf16.mxu0 0
        %739 = vmatmul.mubr.bf16.gmra.mrb[0].mxu0 %v572
        %v740 = vpop.f32.mrb[0].mxu0
        %v741 = vadd.f32 0.0, %v740
        %v742 = vpop.f32.mrb[0].mxu0
        %v743 = vpop.f32.mrb[0].mxu0
        %v744 = vadd.f32 0.0, %v743
        %v745 = vpop.f32.mrb[0].mxu0
        %746 = vmatprep.mubr.bf16.mxu0 0
        %747 = vmatmul.mubr.bf16.gmra.mrb[0].mxu0 %v575
        %v748 = vpop.f32.mrb[0].mxu0
        %v749 = vadd.f32 0.0, %v748
        %v750 = vpop.f32.mrb[0].mxu0
        %v751 = vpop.f32.mrb[0].mxu0
        %v752 = vadd.f32 0.0, %v751
        %v753 = vpop.f32.mrb[0].mxu0
        %754 = vmatprep.mubr.bf16.mxu0 0
        %755 = vmatmul.mubr.bf16.gmra.mrb[0].mxu0 %v578
        %v756 = vpop.f32.mrb[0].mxu0
        %v757 = vadd.f32 0.0, %v756
        %v758 = vpop.f32.mrb[0].mxu0
        %v759 = vpop.f32.mrb[0].mxu0
        %v760 = vadd.f32 0.0, %v759
        %v761 = vpop.f32.mrb[0].mxu0
        %762 = vmatprep.mubr.bf16.mxu0 0
        %763 = vmatmul.mubr.bf16.gmra.mrb[0].mxu0 %v581
        %v764 = vpop.f32.mrb[0].mxu0
        %v765 = vadd.f32 0.0, %v764
        %v766 = vpop.f32.mrb[0].mxu0
        %v767 = vpop.f32.mrb[0].mxu0
        %v768 = vadd.f32 0.0, %v767
        %v769 = vpop.f32.mrb[0].mxu0
        %770 = vmatprep.mubr.bf16.mxu0 0
        %771 = vmatmul.mubr.bf16.gmra.mrb[0].mxu0 %v584
        %v772 = vpop.f32.mrb[0].mxu0
        %v773 = vadd.f32 0.0, %v772
        %v774 = vpop.f32.mrb[0].mxu0
        %v775 = vpop.f32.mrb[0].mxu0
        %v776 = vadd.f32 0.0, %v775
        %v777 = vpop.f32.mrb[0].mxu0
        %778 = vmatprep.mubr.bf16.mxu0 0
        %779 = vmatmul.mubr.bf16.gmra.mrb[0].mxu0 %v587
        %v780 = vpop.f32.mrb[0].mxu0
        %v781 = vadd.f32 0.0, %v780
        %v782 = vpop.f32.mrb[0].mxu0
        %v783 = vpop.f32.mrb[0].mxu0
        %v784 = vadd.f32 0.0, %v783
        %v785 = vpop.f32.mrb[0].mxu0
        %786 = vmatprep.mubr.bf16.mxu0 0
        %787 = vmatmul.mubr.bf16.gmra.mrb[0].mxu0 %v590
        %v788 = vpop.f32.mrb[0].mxu0
        %v789 = vadd.f32 0.0, %v788
        %v790 = vpop.f32.mrb[0].mxu0
        %v791 = vpop.f32.mrb[0].mxu0
        %v792 = vadd.f32 0.0, %v791
        %v793 = vpop.f32.mrb[0].mxu0
        %794 = vmatprep.mubr.bf16.mxu0 0
        %795 = vmatmul.mubr.bf16.gmra.mrb[0].mxu0 %v593
        %v796 = vpop.f32.mrb[0].mxu0
        %v797 = vadd.f32 0.0, %v796
        %v798 = vpop.f32.mrb[0].mxu0
        %v799 = vpop.f32.mrb[0].mxu0
        %v800 = vadd.f32 0.0, %v799
        %v801 = vpop.f32.mrb[0].mxu0
        %802 = vmatprep.mubr.bf16.mxu0 0
        %803 = vmatmul.mubr.bf16.gmra.mrb[0].mxu0 %v596
        %v804 = vpop.f32.mrb[0].mxu0
        %v805 = vadd.f32 0.0, %v804
        %v806 = vpop.f32.mrb[0].mxu0
        %v807 = vpop.f32.mrb[0].mxu0
        %v808 = vadd.f32 0.0, %v807
        %v809 = vpop.f32.mrb[0].mxu0
        %810 = vmatprep.mubr.bf16.mxu0 0
        %811 = vmatmul.mubr.bf16.gmra.mrb[0].mxu0 %v599
        %v812 = vpop.f32.mrb[0].mxu0
        %v813 = vadd.f32 0.0, %v812
        %v814 = vpop.f32.mrb[0].mxu0
        %v815 = vpop.f32.mrb[0].mxu0
        %v816 = vadd.f32 0.0, %v815
        %v817 = vpop.f32.mrb[0].mxu0
        %818 = vmatprep.mubr.bf16.mxu0 0
        %819 = vmatmul.mubr.bf16.gmra.mrb[0].mxu0 %v602
        %v820 = vpop.f32.mrb[0].mxu0
        %v821 = vadd.f32 0.0, %v820
        %v822 = vpop.f32.mrb[0].mxu0
        %v823 = vpop.f32.mrb[0].mxu0
        %v824 = vadd.f32 0.0, %v823
        %v825 = vpop.f32.mrb[0].mxu0
        %826 = vmatprep.mubr.bf16.mxu0 0
        %827 = vmatmul.mubr.bf16.gmra.mrb[0].mxu0 %v605
        %v828 = vpop.f32.mrb[0].mxu0
        %v829 = vadd.f32 0.0, %v828
        %v830 = vpop.f32.mrb[0].mxu0
        %v831 = vpop.f32.mrb[0].mxu0
        %v832 = vadd.f32 0.0, %v831
        %v833 = vpop.f32.mrb[0].mxu0
        %834 = vmatprep.mubr.bf16.mxu0 0
        %835 = vmatmul.mubr.bf16.gmra.mrb[0].mxu0 %v608
        %v836 = vpop.f32.mrb[0].mxu0
        %v837 = vadd.f32 0.0, %v836
        %v838 = vpop.f32.mrb[0].mxu0
        %v839 = vpop.f32.mrb[0].mxu0
        %v840 = vadd.f32 0.0, %v839
        %v841 = vpop.f32.mrb[0].mxu0
        %842 = vmatprep.mubr.bf16.mxu0 0
        %843 = vmatmul.mubr.bf16.gmra.mrb[0].mxu0 %v611
        %v844 = vpop.f32.mrb[0].mxu0
        %v845 = vadd.f32 0.0, %v844
        %v846 = vpop.f32.mrb[0].mxu0
        %v847 = vpop.f32.mrb[0].mxu0
        %v848 = vadd.f32 0.0, %v847
        %v849 = vpop.f32.mrb[0].mxu0
        %850 = vmatprep.mubr.bf16.mxu0 0
        %851 = vmatmul.mubr.bf16.gmra.mrb[0].mxu0 %v614
        %v852 = vpop.f32.mrb[0].mxu0
        %v853 = vadd.f32 0.0, %v852
        %v854 = vpop.f32.mrb[0].mxu0
        %v855 = vpop.f32.mrb[0].mxu0
        %v856 = vadd.f32 0.0, %v855
        %v857 = vpop.f32.mrb[0].mxu0
        %858 = vmatprep.mubr.bf16.mxu0 0
        %859 = vmatmul.mubr.bf16.gmra.mrb[0].mxu0 %v617
        %v860 = vpop.f32.mrb[0].mxu0
        %v861 = vadd.f32 0.0, %v860
        %v862 = vpop.f32.mrb[0].mxu0
        %v863 = vpop.f32.mrb[0].mxu0
        %v864 = vadd.f32 0.0, %v863
        %v865 = vpop.f32.mrb[0].mxu0
        %866 = vmatprep.mubr.bf16.mxu0 0
        %867 = vmatmul.mubr.bf16.gmra.mrb[0].mxu0 %v620
        %v868 = vpop.f32.mrb[0].mxu0
        %v869 = vadd.f32 0.0, %v868
        %v870 = vpop.f32.mrb[0].mxu0
        %v871 = vpop.f32.mrb[0].mxu0
        %v872 = vadd.f32 0.0, %v871
        %v873 = vpop.f32.mrb[0].mxu0
        %874 = vmatprep.mubr.bf16.mxu0 0
        %875 = vmatmul.mubr.bf16.gmra.mrb[0].mxu0 %v623
        %v876 = vpop.f32.mrb[0].mxu0
        %v877 = vadd.f32 0.0, %v876
        %v878 = vpop.f32.mrb[0].mxu0
        %v879 = vpop.f32.mrb[0].mxu0
        %v880 = vadd.f32 0.0, %v879
        %v881 = vpop.f32.mrb[0].mxu0
        %882 = vmatprep.mubr.bf16.mxu0 0
        %883 = vmatmul.mubr.bf16.gmra.mrb[0].mxu0 %v626
        %v884 = vpop.f32.mrb[0].mxu0
        %v885 = vadd.f32 0.0, %v884
        %v886 = vpop.f32.mrb[0].mxu0
        %v887 = vpop.f32.mrb[0].mxu0
        %v888 = vadd.f32 0.0, %v887
        %v889 = vpop.f32.mrb[0].mxu0
        %890 = vmatprep.mubr.bf16.mxu0 0
        %891 = vmatmul.mubr.bf16.gmra.mrb[0].mxu0 %v629
        %v892 = vpop.f32.mrb[0].mxu0
        %v893 = vadd.f32 0.0, %v892
        %v894 = vpop.f32.mrb[0].mxu0
        %v895 = vpop.f32.mrb[0].mxu0
        %v896 = vadd.f32 0.0, %v895
        %v897 = vpop.f32.mrb[0].mxu0
        %898 = vmatprep.mubr.bf16.mxu0 0
        %899 = vmatmul.mubr.bf16.gmra.mrb[0].mxu0 %v632
        %v900 = vpop.f32.mrb[0].mxu0
        %v901 = vadd.f32 0.0, %v900
        %v902 = vpop.f32.mrb[0].mxu0
        %v903 = vpop.f32.mrb[0].mxu0
        %v904 = vadd.f32 0.0, %v903
        %v905 = vpop.f32.mrb[0].mxu0
        %906 = vmatprep.mubr.bf16.mxu0 0
        %907 = vmatmul.mubr.bf16.gmra.mrb[0].mxu0 %v635
        %v908 = vpop.f32.mrb[0].mxu0
        %v909 = vadd.f32 0.0, %v908
        %v910 = vpop.f32.mrb[0].mxu0
        %v911 = vpop.f32.mrb[0].mxu0
        %v912 = vadd.f32 0.0, %v911
        %v913 = vpop.f32.mrb[0].mxu0
        %914 = vmatprep.mubr.bf16.mxu0 0
        %915 = vmatmul.mubr.bf16.gmra.mrb[0].mxu0 %v638
        %v916 = vpop.f32.mrb[0].mxu0
        %v917 = vadd.f32 0.0, %v916
        %v918 = vpop.f32.mrb[0].mxu0
        %v919 = vpop.f32.mrb[0].mxu0
        %v920 = vadd.f32 0.0, %v919
        %v921 = vpop.f32.mrb[0].mxu0
        %922 = vmatprep.mubr.bf16.mxu0 0
        %923 = vmatmul.mubr.bf16.gmra.mrb[0].mxu0 %v641
        %v924 = vpop.f32.mrb[0].mxu0
        %v925 = vadd.f32 0.0, %v924
        %v926 = vpop.f32.mrb[0].mxu0
        %v927 = vpop.f32.mrb[0].mxu0
        %v928 = vadd.f32 0.0, %v927
        %v929 = vpop.f32.mrb[0].mxu0
        %930 = vmatprep.mubr.bf16.mxu0 0
        %931 = vmatmul.mubr.bf16.gmra.mrb[0].mxu0 %v644
        %v932 = vpop.f32.mrb[0].mxu0
        %v933 = vadd.f32 0.0, %v932
        %v934 = vpop.f32.mrb[0].mxu0
        %v935 = vpop.f32.mrb[0].mxu0
        %v936 = vadd.f32 0.0, %v935
        %v937 = vpop.f32.mrb[0].mxu0
        %938 = vdwg.mxu0
        %v939 = vmax.f32 %v685, 0.0
        %v940 = vmax.f32 %v688, 0.0
        %v941 = vmax.f32 %v693, 0.0
        %v942 = vmax.f32 %v696, 0.0
        %v943 = vmax.f32 %v701, 0.0
        %v944 = vmax.f32 %v704, 0.0
        %v945 = vmax.f32 %v709, 0.0
        %v946 = vmax.f32 %v712, 0.0
        %v947 = vmax.f32 %v717, 0.0
        %v948 = vmax.f32 %v720, 0.0
        %v949 = vmax.f32 %v725, 0.0
        %v950 = vmax.f32 %v728, 0.0
        %v951 = vmax.f32 %v733, 0.0
        %v952 = vmax.f32 %v736, 0.0
        %v953 = vmax.f32 %v741, 0.0
        %v954 = vmax.f32 %v744, 0.0
        %v955 = vmax.f32 %v749, 0.0
        %v956 = vmax.f32 %v752, 0.0
        %v957 = vmax.f32 %v757, 0.0
        %v958 = vmax.f32 %v760, 0.0
        %v959 = vmax.f32 %v765, 0.0
        %v960 = vmax.f32 %v768, 0.0
        %v961 = vmax.f32 %v773, 0.0
        %v962 = vmax.f32 %v776, 0.0
        %v963 = vmax.f32 %v781, 0.0
        %v964 = vmax.f32 %v784, 0.0
        %v965 = vmax.f32 %v789, 0.0
        %v966 = vmax.f32 %v792, 0.0
        %v967 = vmax.f32 %v797, 0.0
        %v968 = vmax.f32 %v800, 0.0
        %v969 = vmax.f32 %v805, 0.0
        %v970 = vmax.f32 %v808, 0.0
        %v971 = vmax.f32 %v813, 0.0
        %v972 = vmax.f32 %v816, 0.0
        %v973 = vmax.f32 %v821, 0.0
        %v974 = vmax.f32 %v824, 0.0
        %v975 = vmax.f32 %v829, 0.0
        %v976 = vmax.f32 %v832, 0.0
        %v977 = vmax.f32 %v837, 0.0
        %v978 = vmax.f32 %v840, 0.0
        %v979 = vmax.f32 %v845, 0.0
        %v980 = vmax.f32 %v848, 0.0
        %v981 = vmax.f32 %v853, 0.0
        %v982 = vmax.f32 %v856, 0.0
        %v983 = vmax.f32 %v861, 0.0
        %v984 = vmax.f32 %v864, 0.0
        %v985 = vmax.f32 %v869, 0.0
        %v986 = vmax.f32 %v872, 0.0
        %v987 = vmax.f32 %v877, 0.0
        %v988 = vmax.f32 %v880, 0.0
        %v989 = vmax.f32 %v885, 0.0
        %v990 = vmax.f32 %v888, 0.0
        %v991 = vmax.f32 %v893, 0.0
        %v992 = vmax.f32 %v896, 0.0
        %v993 = vmax.f32 %v901, 0.0
        %v994 = vmax.f32 %v904, 0.0
        %v995 = vmax.f32 %v909, 0.0
        %v996 = vmax.f32 %v912, 0.0
        %v997 = vmax.f32 %v917, 0.0
        %v998 = vmax.f32 %v920, 0.0
        %v999 = vmax.f32 %v925, 0.0
        %v1000 = vmax.f32 %v928, 0.0
        %v1001 = vmax.f32 %v933, 0.0
        %v1002 = vmax.f32 %v936, 0.0
        %v1003 = vld [vmem:[%s2] sm:$0xff]
        %v1004 = vld [vmem:[%s2 + $0x8] sm:$0xff]
        %v1005 = vpack.c.bf16 %v940, %v939
        %v1006 = vpack.c.bf16 %v942, %v941
        %v1007 = vpack.c.bf16 %v944, %v943
        %v1008 = vpack.c.bf16 %v946, %v945
        %v1009 = vpack.c.bf16 %v948, %v947
        %v1010 = vpack.c.bf16 %v950, %v949
        %v1011 = vpack.c.bf16 %v952, %v951
        %v1012 = vpack.c.bf16 %v954, %v953
        %v1013 = vpack.c.bf16 %v956, %v955
        %v1014 = vpack.c.bf16 %v958, %v957
        %v1015 = vpack.c.bf16 %v960, %v959
        %v1016 = vpack.c.bf16 %v962, %v961
        %v1017 = vpack.c.bf16 %v964, %v963
        %v1018 = vpack.c.bf16 %v966, %v965
        %v1019 = vpack.c.bf16 %v968, %v967
        %v1020 = vpack.c.bf16 %v970, %v969
        %v1021 = vpack.c.bf16 %v972, %v971
        %v1022 = vpack.c.bf16 %v974, %v973
        %v1023 = vpack.c.bf16 %v976, %v975
        %v1024 = vpack.c.bf16 %v978, %v977
        %v1025 = vpack.c.bf16 %v980, %v979
        %v1026 = vpack.c.bf16 %v982, %v981
        %v1027 = vpack.c.bf16 %v984, %v983
        %v1028 = vpack.c.bf16 %v986, %v985
        %v1029 = vpack.c.bf16 %v988, %v987
        %v1030 = vpack.c.bf16 %v990, %v989
        %v1031 = vpack.c.bf16 %v992, %v991
        %v1032 = vpack.c.bf16 %v994, %v993
        %v1033 = vpack.c.bf16 %v996, %v995
        %v1034 = vpack.c.bf16 %v998, %v997
        %v1035 = vpack.c.bf16 %v1000, %v999
        %v1036 = vpack.c.bf16 %v1002, %v1001
        %v1039 = vunpack.c.l.b16 %v1003
        %v1040 = vunpack.c.h.b16 %v1003
        %v1041 = vunpack.c.l.b16 %v1004
        %v1042 = vunpack.c.h.b16 %v1004
        %v1043 = vpack.c.b16 %v1039, %v1039
        %v1044 = vpack.c.b16 %v1040, %v1040
        %v1045 = vpack.c.b16 %v1041, %v1041
        %v1046 = vpack.c.b16 %v1042, %v1042
        %1051 = vmatprep.subr.bf16.mxu0 0
        %1052 = vmatpush1.bf16.msra.mxu0 %v1005
        %1053 = vmatprep.subr.bf16.mxu0 0
        %1054 = vmatpush1.bf16.msra.mxu0 %v1006
        %1055 = vmatprep.subr.bf16.mxu0 0
        %1056 = vmatpush1.bf16.msra.mxu0 %v1007
        %1057 = vmatprep.subr.bf16.mxu0 0
        %1058 = vmatpush1.bf16.msra.mxu0 %v1008
        %1059 = vmatprep.subr.bf16.mxu0 0
        %1060 = vmatpush1.bf16.msra.mxu0 %v1009
        %1061 = vmatprep.subr.bf16.mxu0 0
        %1062 = vmatpush1.bf16.msra.mxu0 %v1010
        %1063 = vmatprep.subr.bf16.mxu0 0
        %1064 = vmatpush1.bf16.msra.mxu0 %v1011
        %1065 = vmatprep.subr.bf16.mxu0 0
        %1066 = vmatpush1.bf16.msra.mxu0 %v1012
        %1067 = vmatprep.subr.bf16.mxu0 0
        %1068 = vmatpush1.bf16.msra.mxu0 %v1013
        %1069 = vmatprep.subr.bf16.mxu0 0
        %1070 = vmatpush1.bf16.msra.mxu0 %v1014
        %1071 = vmatprep.subr.bf16.mxu0 0
        %1072 = vmatpush1.bf16.msra.mxu0 %v1015
        %1073 = vmatprep.subr.bf16.mxu0 0
        %1074 = vmatpush1.bf16.msra.mxu0 %v1016
        %1075 = vmatprep.subr.bf16.mxu0 0
        %1076 = vmatpush1.bf16.msra.mxu0 %v1017
        %1077 = vmatprep.subr.bf16.mxu0 0
        %1078 = vmatpush1.bf16.msra.mxu0 %v1018
        %1079 = vmatprep.subr.bf16.mxu0 0
        %1080 = vmatpush1.bf16.msra.mxu0 %v1019
        %1081 = vmatprep.subr.bf16.mxu0 0
        %1082 = vmatpush1.bf16.msra.mxu0 %v1020
        %1083 = vmatprep.mubr.bf16.mxu0 %v1044
        %1084 = vmatmul.mubr.bf16.gmra.mrb[0].mxu0 %v1043
        %v1085 = vpop.f32.mrb[0].mxu0
        %v1086 = vadd.f32 0.0, %v1085
        %v1087 = vpop.f32.mrb[0].mxu0
        %v1088 = vpop.f32.mrb[0].mxu0
        %v1089 = vpop.f32.mrb[0].mxu0
        %1090 = vdwg.mxu0
        %1091 = vmatprep.subr.bf16.mxu0 0
        %1092 = vmatpush1.bf16.msra.mxu0 %v1021
        %1093 = vmatprep.subr.bf16.mxu0 0
        %1094 = vmatpush1.bf16.msra.mxu0 %v1022
        %1095 = vmatprep.subr.bf16.mxu0 0
        %1096 = vmatpush1.bf16.msra.mxu0 %v1023
        %1097 = vmatprep.subr.bf16.mxu0 0
        %1098 = vmatpush1.bf16.msra.mxu0 %v1024
        %1099 = vmatprep.subr.bf16.mxu0 0
        %1100 = vmatpush1.bf16.msra.mxu0 %v1025
        %1101 = vmatprep.subr.bf16.mxu0 0
        %1102 = vmatpush1.bf16.msra.mxu0 %v1026
        %1103 = vmatprep.subr.bf16.mxu0 0
        %1104 = vmatpush1.bf16.msra.mxu0 %v1027
        %1105 = vmatprep.subr.bf16.mxu0 0
        %1106 = vmatpush1.bf16.msra.mxu0 %v1028
        %1107 = vmatprep.subr.bf16.mxu0 0
        %1108 = vmatpush1.bf16.msra.mxu0 %v1029
        %1109 = vmatprep.subr.bf16.mxu0 0
        %1110 = vmatpush1.bf16.msra.mxu0 %v1030
        %1111 = vmatprep.subr.bf16.mxu0 0
        %1112 = vmatpush1.bf16.msra.mxu0 %v1031
        %1113 = vmatprep.subr.bf16.mxu0 0
        %1114 = vmatpush1.bf16.msra.mxu0 %v1032
        %1115 = vmatprep.subr.bf16.mxu0 0
        %1116 = vmatpush1.bf16.msra.mxu0 %v1033
        %1117 = vmatprep.subr.bf16.mxu0 0
        %1118 = vmatpush1.bf16.msra.mxu0 %v1034
        %1119 = vmatprep.subr.bf16.mxu0 0
        %1120 = vmatpush1.bf16.msra.mxu0 %v1035
        %1121 = vmatprep.subr.bf16.mxu0 0
        %1122 = vmatpush1.bf16.msra.mxu0 %v1036
        %1123 = vmatprep.mubr.bf16.mxu0 %v1046
        %1124 = vmatmul.mubr.bf16.gmra.mrb[0].mxu0 %v1045
        %v1125 = vpop.f32.mrb[0].mxu0
        %v1126 = vadd.f32 %v1086, %v1125
        %v1127 = vpop.f32.mrb[0].mxu0
        %v1128 = vpop.f32.mrb[0].mxu0
        %v1129 = vpop.f32.mrb[0].mxu0
        %1130 = vdwg.mxu0
        %v1131 = vld [vmem:[#allocation2] sm:$0x1]
        %1133 = vset.pattern.permute.xlu0 0
        %1134 = vperm.xlu0 %1133, %v1131
        %v1135 = vpop.permute.xlu0 %1134
        %v1137 = vlaneseq
        %v1138 = vshrl.u32 %v1137, 7
        %v1139 = vsub.s32 0, %v1138
        %v1140 = vrot.slane %v1135, %v1139
        %v1141 = vadd.f32 %v1126, %v1140
        %1142 = vst [vmem:[%s287] sm:$0x1] %v1141
        %s1143 = sand.u32 %s133, 1
        %s1144 = scalar_lea.sflag [#allocation5], %s1143
        %s1145 = sand.u32 %s133, 1
        %s1146 = scalar_lea.vmem [#allocation4], %s1145
        // Predicated region
        $region78: #{tpu_custom_call.1} parent=72 // pred_check
          %p1147 = pneg %p143
        $region79: #{tpu_custom_call.1} parent=72 // pred_check_branch
          %1149 = sbr.rel (%p1147) target = $region81
        $region80: #{tpu_custom_call.1} parent=72 // pred_region
          %s1151 = ssub.s32 16, 16
          %1152 = vsyncadd %s1144, %s1151
          %s1153 = smul.addr %s24, 2
          %s1154 = sadd.s32 %s25, %s1153
          %s1155 = smul.addr %s1154, 16
          %s1156 = scalar_lea.hbm %s4, %s1155
          %s1158 = sshll.u32 %s1146, 4
          %s1159 = int_to_ptr.vmem [resolvable:$true] %s1158
          %1161 = dma.vmem_to_hbm [thread:$0]  %s1159, 16, %s1156, %s1144
        $region81: #{tpu_custom_call.1} parent=72 // pred_fallthru
          _
      $region73: #{tpu_custom_call.1} parent=5 // pred_fallthru
        _
      %p1162 = scmp.le.s32.totalorder 2, %s15
      // Predicated region
      $region82: #{tpu_custom_call.1} parent=5 // pred_check
        %p1163 = pneg %p1162
      $region83: #{tpu_custom_call.1} parent=5 // pred_check_branch
        %1165 = sbr.rel (%p1163) target = $region85
      $region84: #{tpu_custom_call.1} parent=5 // pred_region
        %s1166 = ssub.s32 %s15, 2
        // Predicated region
        $region86: #{tpu_custom_call.1} parent=84 // pred_check
          %p1167 = pneg %p149
        $region87: #{tpu_custom_call.1} parent=84 // pred_check_branch
          %1169 = sbr.rel (%p1167) target = $region89
        $region88: #{tpu_custom_call.1} parent=84 // pred_region
          %s1170 = sand.u32 %s134, 1
          %s1171 = scalar_lea.sflag [#allocation5], %s1170
          %s1172 = sand.u32 %s134, 1
          %s1173 = scalar_lea.vmem [#allocation4], %s1172
          %1174 = dma.done %s1171, 16
        $region89: #{tpu_custom_call.1} parent=84 // pred_fallthru
          _
      $region85: #{tpu_custom_call.1} parent=5 // pred_fallthru
        _
    $region6: #{tpu_custom_call.1} parent=1 // loop_footer
      %s19 = sadd.s32 1, %s15
    $region7: #{tpu_custom_call.1} parent=1 // loop_footer_branch
      %14 = sbr.rel target = $region3
    $region8: #{tpu_custom_call.1} parent=1 // loop_exit
      _
    %1175 = vsyncpa [#allocation5], 1
    %s1176 = scalar_lea.sflag [#allocation5], 1
    %1177 = vsyncpa %s1176, 1

</llo_original>
